<compile_context>
chip_gen: v6e
topology: v6e:2x2x1
jax: 0.10.0
libtpu: 0.0.40
codegen_flags: <defaults>
</compile_context>

<pallas_src>
import functools

import jax
import jax.numpy as jnp
from jax.experimental import pallas as pl
from jax.experimental.pallas import tpu as pltpu


# Scoped-VMEM limit: below v7x's 64 MiB physical, free headroom vs the 16/32
# MiB defaults on v5e/v6e (both have 128 MiB physical).
_VMEM_LIMIT_BYTES = 48 * 1024 * 1024
# Working-set budget used to size the row tile (inputs + f32 temporaries).
_TILE_BUDGET_BYTES = 40 * 1024 * 1024


def _sublane_multiple(dtype) -> int:
    """Minimum second-minor tile multiple for a dtype (8/16/32 for 4/2/1 B)."""
    return max(8, 32 // jnp.dtype(dtype).itemsize)


def _round_up(v, m):
    return ((v + m - 1) // m) * m


def _choose_tile_n(c, x_itemsize, y_itemsize, sublane,
                   budget_bytes=_TILE_BUDGET_BYTES):
    """Rows per block, budgeting double-buffered inputs + f32 temporaries."""
    # 2x (double-buffered) x and y input blocks plus ~4 f32 (tile_n, C)
    # temporaries (x_f32 / y_f32 / z / exp-or-num_contrib).
    per_row = c * (2 * (x_itemsize + y_itemsize) + 4 * 4)
    tile = budget_bytes // max(per_row, 1)
    return max(sublane, min(1024, (tile // sublane) * sublane))


def _nce_partials_kernel(x_ref, y_ref, num_ref, den_ref, *,
                         n_rows, tile_n, blocks_per_split, emit_masked):
    s = pl.program_id(0)          # split (parallel) axis
    i = pl.program_id(1)          # row-tile (reduction) axis

    @pl.when(i == 0)
    def _init():
        num_ref[...] = jnp.zeros_like(num_ref)
        den_ref[...] = jnp.zeros_like(den_ref)

    def accumulate(x, y, valid):
        # log-softmax pieces over the class (lane) axis; logp = z - lse.
        m = jnp.max(x, axis=1, keepdims=True)                       # (tile_n, 1)
        z = x - m
        lse = jnp.log(jnp.sum(jnp.exp(z), axis=1, keepdims=True))   # (tile_n, 1)
        num_c = y * (z - lse)                                       # (tile_n, C)
        if valid is not None:
            z = jnp.where(valid, z, 0.0)
            lse = jnp.where(valid, lse, 0.0)
            num_c = jnp.where(valid, num_c, 0.0)
        # den partial: -sum_n logp = sum_n lse - sum_n z (no logp tile).
        den_ref[...] += jnp.sum(lse) - jnp.sum(z, axis=0, keepdims=True)
        # num partial: -sum_n y * logp
        num_ref[...] += -jnp.sum(num_c, axis=0, keepdims=True)

    if not emit_masked:
        # N divides the split/tile structure exactly: no masking anywhere.
        accumulate(x_ref[...].astype(jnp.float32),
                   y_ref[...].astype(jnp.float32), None)
    else:
        row_start = (s * blocks_per_split + i) * tile_n
        is_full = row_start + tile_n <= n_rows

        @pl.when(is_full)
        def _steady_state():
            accumulate(x_ref[...].astype(jnp.float32),
                       y_ref[...].astype(jnp.float32), None)

        @pl.when(jnp.logical_not(is_full))
        def _ragged_tail():
            row_ids = row_start + jax.lax.broadcasted_iota(
                jnp.int32, (tile_n, 1), 0)
            valid = row_ids < n_rows                                # (tile_n, 1)
            x = jnp.where(valid, x_ref[...].astype(jnp.float32), 0.0)
            y = y_ref[...].astype(jnp.float32)
            accumulate(x, y, valid)


def normalized_cross_entropy(x, y, scale=1.0, *, tile_n=None, num_splits=2):
    """Pallas TPU implementation of NormalizedCrossEntropy.forward(x, y)."""
    assert x.shape == y.shape and x.ndim == 2
    n, c = x.shape

    sublane = max(_sublane_multiple(x.dtype), _sublane_multiple(y.dtype))
    if tile_n is None:
        tile_n = _choose_tile_n(c, x.dtype.itemsize, y.dtype.itemsize, sublane)

    num_splits = max(1, int(num_splits))
    rows_per_split = int(pl.cdiv(n, num_splits))
    # Dtype-aware sublane rounding, capped so a block never dwarfs its split.
    tile_n = min(int(tile_n), _round_up(rows_per_split, sublane))
    tile_n = max(sublane, (tile_n // sublane) * sublane)

    blocks_per_split = int(pl.cdiv(rows_per_split, tile_n))
    n_blocks = int(pl.cdiv(n, tile_n))
    grid = (num_splits, blocks_per_split)
    # Masking is only emitted when some tile can be partial / out of range.
    emit_masked = (num_splits * blocks_per_split * tile_n) != n

    def xy_index_map(s, i):
        # Clamp: splits that over-cover N re-read the last valid block; the
        # kernel masks those rows out (zero contribution).
        return (jnp.minimum(s * blocks_per_split + i, n_blocks - 1), 0)

    kernel = functools.partial(
        _nce_partials_kernel, n_rows=n, tile_n=tile_n,
        blocks_per_split=blocks_per_split, emit_masked=emit_masked)

    in_bytes = x.size * x.dtype.itemsize + y.size * y.dtype.itemsize
    out_bytes = 2 * num_splits * c * 4

    # TODO(synk): very large C (e.g. 128K vocab) collapses tile_n to the
    # sublane minimum; an online-softmax with C tiled on an inner grid axis
    # would keep tile_n >= 256 in that regime.
    num_p, den_p = pl.pallas_call(
        kernel,
        out_shape=(jax.ShapeDtypeStruct((num_splits, 1, c), jnp.float32),
                   jax.ShapeDtypeStruct((num_splits, 1, c), jnp.float32)),
        grid=grid,
        in_specs=[
            pl.BlockSpec((tile_n, c), xy_index_map),   # x row-tile
            pl.BlockSpec((tile_n, c), xy_index_map),   # y row-tile
        ],
        out_specs=(
            pl.BlockSpec((1, 1, c), lambda s, i: (s, 0, 0)),   # num partials
            pl.BlockSpec((1, 1, c), lambda s, i: (s, 0, 0)),   # den partials
        ),
        compiler_params=pltpu.CompilerParams(
            dimension_semantics=("parallel", "arbitrary"),
            vmem_limit_bytes=_VMEM_LIMIT_BYTES),
        cost_estimate=pl.CostEstimate(
            flops=6 * n * c,
            transcendentals=n * c + n,
            bytes_accessed=in_bytes + out_bytes),
    )(x, y)

    # Tiny epilogue: combine per-split partials, divide, mean, scale.
    num = jnp.sum(num_p, axis=(0, 1))          # (C,)
    den = jnp.sum(den_p, axis=(0, 1))          # (C,)
    nce = num / den
    return jnp.asarray(scale, jnp.float32) * jnp.mean(nce)


def _reference(x, y, scale=1.0):
    logp = jax.nn.log_softmax(x.astype(jnp.float32), axis=1)
    yf = y.astype(jnp.float32)
    nce = -jnp.sum(yf * logp, axis=0) / -jnp.sum(logp, axis=0)
    return scale * jnp.mean(nce)


if __name__ == "__main__":
    key = jax.random.PRNGKey(0)
    kx, ky = jax.random.split(key)

    # N=60, C=256: small but exercises the 2-way split, a multi-step pipelined
    # inner axis (with explicit tile_n=16) and the masked ragged tail.
    N, C = 60, 256
    x = jax.random.normal(kx, (N, C), dtype=jnp.float32)
    labels = jax.random.randint(ky, (N,), 0, C)
    y = jax.nn.one_hot(labels, C, dtype=jnp.float32)   # dense (soft labels OK)
    scale = 2.5

    ref = _reference(x, y, scale)

    # Explicit small tile: (2, 2) grid, masking only on the final partial tile.
    out = jax.block_until_ready(
        jax.jit(functools.partial(normalized_cross_entropy, tile_n=16))(
            x, y, scale))
    assert jnp.allclose(out, ref, rtol=1e-5, atol=1e-5), (out, ref)

    # Default auto-sized tile path.
    out2 = jax.block_until_ready(
        jax.jit(normalized_cross_entropy)(x, y, scale))
    assert jnp.allclose(out2, ref, rtol=1e-5, atol=1e-5), (out2, ref)

    # bf16 inputs stay bf16 in HBM (kernel upcasts internally; 16-row tiles).
    xb = x.astype(jnp.bfloat16)
    yb = y.astype(jnp.bfloat16)
    out3 = jax.block_until_ready(
        jax.jit(normalized_cross_entropy)(xb, yb, scale))
    ref3 = _reference(xb, yb, scale)
    assert jnp.allclose(out3, ref3, rtol=1e-3, atol=1e-3), (out3, ref3)

    print("KERNEL_OK")
</pallas_src>

<mosaic_0001>
module attributes {stable_mosaic.version = 11 : i64} {
  func.func @_nce_partials_kernel(%arg0: i32, %arg1: i32, %arg2: memref<16x256xf32, #tpu.memory_space<vmem>>, %arg3: memref<16x256xf32, #tpu.memory_space<vmem>>, %arg4: memref<1x1x256xf32, #tpu.memory_space<vmem>>, %arg5: memref<1x1x256xf32, #tpu.memory_space<vmem>>) attributes {dimension_semantics = [#tpu.dimension_semantics<parallel>, #tpu.dimension_semantics<arbitrary>], iteration_bounds = array<i64: 2, 2>, scalar_prefetch = 0 : i64, scratch_operands = 0 : i64, tpu.core_type = #tpu.core_type<tc>, window_params = [{transform_indices = @transform_0, window_bounds = array<i64: 16, 256>}, {transform_indices = @transform_1, window_bounds = array<i64: 16, 256>}, {transform_indices = @transform_2, window_bounds = array<i64: 1, 1, 256>}, {transform_indices = @transform_3, window_bounds = array<i64: 1, 1, 256>}]} {
    %c0_i32 = arith.constant 0 : i32
    %0 = arith.cmpi eq, %arg1, %c0_i32 : i32
    %1 = arith.extui %0 : i1 to i32
    %c0_i32_0 = arith.constant 0 : i32
    %2 = arith.cmpi ne, %1, %c0_i32_0 : i32
    scf.if %2 {
      %cst = arith.constant 0.000000e+00 : f32
      %13 = vector.broadcast %cst : f32 to vector<1x1x256xf32>
      %c0 = arith.constant 0 : index
      %c0_4 = arith.constant 0 : index
      %c0_5 = arith.constant 0 : index
      %14 = vector.load %arg4[%c0, %c0_4, %c0_5] : memref<1x1x256xf32, #tpu.memory_space<vmem>>, vector<1x1x256xf32>
      tpu.vector_store %arg4[%c0, %c0_4, %c0_5], %13 {strides = array<i32>} : memref<1x1x256xf32, #tpu.memory_space<vmem>>, vector<1x1x256xf32>,
      %cst_6 = arith.constant 0.000000e+00 : f32
      %15 = vector.broadcast %cst_6 : f32 to vector<1x1x256xf32>
      %c0_7 = arith.constant 0 : index
      %c0_8 = arith.constant 0 : index
      %c0_9 = arith.constant 0 : index
      %16 = vector.load %arg5[%c0_7, %c0_8, %c0_9] : memref<1x1x256xf32, #tpu.memory_space<vmem>>, vector<1x1x256xf32>
      tpu.vector_store %arg5[%c0_7, %c0_8, %c0_9], %15 {strides = array<i32>} : memref<1x1x256xf32, #tpu.memory_space<vmem>>, vector<1x1x256xf32>,
    } else {
    }
    %c2_i32 = arith.constant 2 : i32
    %3 = arith.muli %arg0, %c2_i32 : i32
    %4 = arith.addi %3, %arg1 : i32
    %c16_i32 = arith.constant 16 : i32
    %5 = arith.muli %4, %c16_i32 : i32
    %c16_i32_1 = arith.constant 16 : i32
    %6 = arith.addi %5, %c16_i32_1 : i32
    %c60_i32 = arith.constant 60 : i32
    %7 = arith.cmpi sle, %6, %c60_i32 : i32
    %8 = arith.extui %7 : i1 to i32
    %c0_i32_2 = arith.constant 0 : i32
    %9 = arith.cmpi ne, %8, %c0_i32_2 : i32
    scf.if %9 {
      %c0 = arith.constant 0 : index
      %c0_4 = arith.constant 0 : index
      %13 = vector.load %arg2[%c0, %c0_4] : memref<16x256xf32, #tpu.memory_space<vmem>>, vector<16x256xf32>
      %c0_5 = arith.constant 0 : index
      %c0_6 = arith.constant 0 : index
      %14 = vector.load %arg3[%c0_5, %c0_6] : memref<16x256xf32, #tpu.memory_space<vmem>>, vector<16x256xf32>
      %cst = arith.constant dense<0xFF800000> : vector<16xf32>
      %15 = vector.multi_reduction <maximumf>, %13, %cst [1] : vector<16x256xf32> to vector<16xf32>
      %16 = vector.shape_cast %15 : vector<16xf32> to vector<16x1xf32>
      %17 = vector.broadcast %16 : vector<16x1xf32> to vector<16x256xf32>
      %18 = arith.subf %13, %17 : vector<16x256xf32>
      %19 = math.exp %18 : vector<16x256xf32>
      %cst_7 = arith.constant dense<0.000000e+00> : vector<16xf32>
      %20 = vector.multi_reduction <add>, %19, %cst_7 [1] : vector<16x256xf32> to vector<16xf32>
      %21 = vector.shape_cast %20 : vector<16xf32> to vector<16x1xf32>
      %22 = math.log %21 : vector<16x1xf32>
      %23 = vector.broadcast %22 : vector<16x1xf32> to vector<16x256xf32>
      %24 = arith.subf %18, %23 : vector<16x256xf32>
      %25 = arith.mulf %14, %24 : vector<16x256xf32>
      %c0_8 = arith.constant 0 : index
      %c0_9 = arith.constant 0 : index
      %c0_10 = arith.constant 0 : index
      %26 = vector.load %arg5[%c0_8, %c0_9, %c0_10] : memref<1x1x256xf32, #tpu.memory_space<vmem>>, vector<1x1x256xf32>
      %27 = vector.shape_cast %22 : vector<16x1xf32> to vector<1x16x1xf32>
      %cst_11 = arith.constant dense<0.000000e+00> : vector<1xf32>
      %28 = vector.multi_reduction <add>, %27, %cst_11 [1, 2] : vector<1x16x1xf32> to vector<1xf32>
      %29 = vector.shape_cast %28 : vector<1xf32> to vector<1x1x1xf32>
      %30 = vector.extract %29[0, 0, 0] : f32 from vector<1x1x1xf32>
      %cst_12 = arith.constant dense<0.000000e+00> : vector<256xf32>
      %31 = vector.multi_reduction <add>, %18, %cst_12 [0] : vector<16x256xf32> to vector<256xf32>
      %32 = vector.shape_cast %31 : vector<256xf32> to vector<1x256xf32>
      %33 = vector.broadcast %30 : f32 to vector<1x256xf32>
      %34 = arith.subf %33, %32 : vector<1x256xf32>
      %35 = vector.shape_cast %34 : vector<1x256xf32> to vector<1x1x256xf32>
      %36 = arith.addf %26, %35 : vector<1x1x256xf32>
      %c0_13 = arith.constant 0 : index
      %c0_14 = arith.constant 0 : index
      %c0_15 = arith.constant 0 : index
      %37 = vector.load %arg5[%c0_13, %c0_14, %c0_15] : memref<1x1x256xf32, #tpu.memory_space<vmem>>, vector<1x1x256xf32>
      tpu.vector_store %arg5[%c0_13, %c0_14, %c0_15], %36 {strides = array<i32>} : memref<1x1x256xf32, #tpu.memory_space<vmem>>, vector<1x1x256xf32>,
      %c0_16 = arith.constant 0 : index
      %c0_17 = arith.constant 0 : index
      %c0_18 = arith.constant 0 : index
      %38 = vector.load %arg4[%c0_16, %c0_17, %c0_18] : memref<1x1x256xf32, #tpu.memory_space<vmem>>, vector<1x1x256xf32>
      %cst_19 = arith.constant dense<0.000000e+00> : vector<256xf32>
      %39 = vector.multi_reduction <add>, %25, %cst_19 [0] : vector<16x256xf32> to vector<256xf32>
      %40 = vector.shape_cast %39 : vector<256xf32> to vector<1x256xf32>
      %cst_20 = arith.constant 0.000000e+00 : f32
      %41 = vector.broadcast %cst_20 : f32 to vector<1x256xf32>
      %42 = arith.subf %41, %40 : vector<1x256xf32>
      %43 = vector.shape_cast %42 : vector<1x256xf32> to vector<1x1x256xf32>
      %44 = arith.addf %38, %43 : vector<1x1x256xf32>
      %c0_21 = arith.constant 0 : index
      %c0_22 = arith.constant 0 : index
      %c0_23 = arith.constant 0 : index
      %45 = vector.load %arg4[%c0_21, %c0_22, %c0_23] : memref<1x1x256xf32, #tpu.memory_space<vmem>>, vector<1x1x256xf32>
      tpu.vector_store %arg4[%c0_21, %c0_22, %c0_23], %44 {strides = array<i32>} : memref<1x1x256xf32, #tpu.memory_space<vmem>>, vector<1x1x256xf32>,
    } else {
    }
    %true = arith.constant true
    %10 = arith.xori %7, %true : i1
    %11 = arith.extui %10 : i1 to i32
    %c0_i32_3 = arith.constant 0 : i32
    %12 = arith.cmpi ne, %11, %c0_i32_3 : i32
    scf.if %12 {
      %13 = tpu.iota {dimensions = array<i32: 0>} : vector<16x1xi32>
      %14 = vector.broadcast %5 : i32 to vector<16x1xi32>
      %15 = arith.addi %14, %13 : vector<16x1xi32>
      %c60_i32_4 = arith.constant 60 : i32
      %16 = vector.broadcast %c60_i32_4 : i32 to vector<16x1xi32>
      %17 = arith.cmpi slt, %15, %16 : vector<16x1xi32>
      %c0 = arith.constant 0 : index
      %c0_5 = arith.constant 0 : index
      %18 = vector.load %arg2[%c0, %c0_5] : memref<16x256xf32, #tpu.memory_space<vmem>>, vector<16x256xf32>
      %cst = arith.constant 0.000000e+00 : f32
      %19 = vector.shape_cast %17 : vector<16x1xi1> to vector<16x1xi1>
      %20 = vector.broadcast %19 : vector<16x1xi1> to vector<16x256xi1>
      %21 = vector.broadcast %cst : f32 to vector<16x256xf32>
      %22 = arith.select %20, %18, %21 : vector<16x256xi1>, vector<16x256xf32>
      %c0_6 = arith.constant 0 : index
      %c0_7 = arith.constant 0 : index
      %23 = vector.load %arg3[%c0_6, %c0_7] : memref<16x256xf32, #tpu.memory_space<vmem>>, vector<16x256xf32>
      %cst_8 = arith.constant dense<0xFF800000> : vector<16xf32>
      %24 = vector.multi_reduction <maximumf>, %22, %cst_8 [1] : vector<16x256xf32> to vector<16xf32>
      %25 = vector.shape_cast %24 : vector<16xf32> to vector<16x1xf32>
      %26 = vector.broadcast %25 : vector<16x1xf32> to vector<16x256xf32>
      %27 = arith.subf %22, %26 : vector<16x256xf32>
      %28 = math.exp %27 : vector<16x256xf32>
      %cst_9 = arith.constant dense<0.000000e+00> : vector<16xf32>
      %29 = vector.multi_reduction <add>, %28, %cst_9 [1] : vector<16x256xf32> to vector<16xf32>
      %30 = vector.shape_cast %29 : vector<16xf32> to vector<16x1xf32>
      %31 = math.log %30 : vector<16x1xf32>
      %32 = vector.broadcast %31 : vector<16x1xf32> to vector<16x256xf32>
      %33 = arith.subf %27, %32 : vector<16x256xf32>
      %34 = arith.mulf %23, %33 : vector<16x256xf32>
      %cst_10 = arith.constant 0.000000e+00 : f32
      %35 = vector.shape_cast %17 : vector<16x1xi1> to vector<16x1xi1>
      %36 = vector.broadcast %35 : vector<16x1xi1> to vector<16x256xi1>
      %37 = vector.broadcast %cst_10 : f32 to vector<16x256xf32>
      %38 = arith.select %36, %27, %37 : vector<16x256xi1>, vector<16x256xf32>
      %cst_11 = arith.constant 0.000000e+00 : f32
      %39 = vector.broadcast %cst_11 : f32 to vector<16x1xf32>
      %40 = arith.select %17, %31, %39 : vector<16x1xi1>, vector<16x1xf32>
      %cst_12 = arith.constant 0.000000e+00 : f32
      %41 = vector.shape_cast %17 : vector<16x1xi1> to vector<16x1xi1>
      %42 = vector.broadcast %41 : vector<16x1xi1> to vector<16x256xi1>
      %43 = vector.broadcast %cst_12 : f32 to vector<16x256xf32>
      %44 = arith.select %42, %34, %43 : vector<16x256xi1>, vector<16x256xf32>
      %c0_13 = arith.constant 0 : index
      %c0_14 = arith.constant 0 : index
      %c0_15 = arith.constant 0 : index
      %45 = vector.load %arg5[%c0_13, %c0_14, %c0_15] : memref<1x1x256xf32, #tpu.memory_space<vmem>>, vector<1x1x256xf32>
      %46 = vector.shape_cast %40 : vector<16x1xf32> to vector<1x16x1xf32>
      %cst_16 = arith.constant dense<0.000000e+00> : vector<1xf32>
      %47 = vector.multi_reduction <add>, %46, %cst_16 [1, 2] : vector<1x16x1xf32> to vector<1xf32>
      %48 = vector.shape_cast %47 : vector<1xf32> to vector<1x1x1xf32>
      %49 = vector.extract %48[0, 0, 0] : f32 from vector<1x1x1xf32>
      %cst_17 = arith.constant dense<0.000000e+00> : vector<256xf32>
      %50 = vector.multi_reduction <add>, %38, %cst_17 [0] : vector<16x256xf32> to vector<256xf32>
      %51 = vector.shape_cast %50 : vector<256xf32> to vector<1x256xf32>
      %52 = vector.broadcast %49 : f32 to vector<1x256xf32>
      %53 = arith.subf %52, %51 : vector<1x256xf32>
      %54 = vector.shape_cast %53 : vector<1x256xf32> to vector<1x1x256xf32>
      %55 = arith.addf %45, %54 : vector<1x1x256xf32>
      %c0_18 = arith.constant 0 : index
      %c0_19 = arith.constant 0 : index
      %c0_20 = arith.constant 0 : index
      %56 = vector.load %arg5[%c0_18, %c0_19, %c0_20] : memref<1x1x256xf32, #tpu.memory_space<vmem>>, vector<1x1x256xf32>
      tpu.vector_store %arg5[%c0_18, %c0_19, %c0_20], %55 {strides = array<i32>} : memref<1x1x256xf32, #tpu.memory_space<vmem>>, vector<1x1x256xf32>,
      %c0_21 = arith.constant 0 : index
      %c0_22 = arith.constant 0 : index
      %c0_23 = arith.constant 0 : index
      %57 = vector.load %arg4[%c0_21, %c0_22, %c0_23] : memref<1x1x256xf32, #tpu.memory_space<vmem>>, vector<1x1x256xf32>
      %cst_24 = arith.constant dense<0.000000e+00> : vector<256xf32>
      %58 = vector.multi_reduction <add>, %44, %cst_24 [0] : vector<16x256xf32> to vector<256xf32>
      %59 = vector.shape_cast %58 : vector<256xf32> to vector<1x256xf32>
      %cst_25 = arith.constant 0.000000e+00 : f32
      %60 = vector.broadcast %cst_25 : f32 to vector<1x256xf32>
      %61 = arith.subf %60, %59 : vector<1x256xf32>
      %62 = vector.shape_cast %61 : vector<1x256xf32> to vector<1x1x256xf32>
      %63 = arith.addf %57, %62 : vector<1x1x256xf32>
      %c0_26 = arith.constant 0 : index
      %c0_27 = arith.constant 0 : index
      %c0_28 = arith.constant 0 : index
      %64 = vector.load %arg4[%c0_26, %c0_27, %c0_28] : memref<1x1x256xf32, #tpu.memory_space<vmem>>, vector<1x1x256xf32>
      tpu.vector_store %arg4[%c0_26, %c0_27, %c0_28], %63 {strides = array<i32>} : memref<1x1x256xf32, #tpu.memory_space<vmem>>, vector<1x1x256xf32>,
    } else {
    }
    return
  }
  func.func @transform_0(%arg0: i32, %arg1: i32) -> (i32, i32) {
    %c2_i32 = arith.constant 2 : i32
    %0 = arith.muli %arg0, %c2_i32 : i32
    %1 = arith.addi %0, %arg1 : i32
    %c3_i32 = arith.constant 3 : i32
    %2 = arith.minsi %1, %c3_i32 : i32
    %c0_i32 = arith.constant 0 : i32
    %c0_i32_0 = arith.constant 0 : i32
    return %2, %c0_i32 : i32, i32
  }
  func.func @transform_1(%arg0: i32, %arg1: i32) -> (i32, i32) {
    %c2_i32 = arith.constant 2 : i32
    %0 = arith.muli %arg0, %c2_i32 : i32
    %1 = arith.addi %0, %arg1 : i32
    %c3_i32 = arith.constant 3 : i32
    %2 = arith.minsi %1, %c3_i32 : i32
    %c0_i32 = arith.constant 0 : i32
    %c0_i32_0 = arith.constant 0 : i32
    return %2, %c0_i32 : i32, i32
  }
  func.func @transform_2(%arg0: i32, %arg1: i32) -> (i32, i32, i32) {
    %c0_i32 = arith.constant 0 : i32
    %c0_i32_0 = arith.constant 0 : i32
    %c0_i32_1 = arith.constant 0 : i32
    return %arg0, %c0_i32, %c0_i32_0 : i32, i32, i32
  }
  func.func @transform_3(%arg0: i32, %arg1: i32) -> (i32, i32, i32) {
    %c0_i32 = arith.constant 0 : i32
    %c0_i32_0 = arith.constant 0 : i32
    %c0_i32_1 = arith.constant 0 : i32
    return %arg0, %c0_i32, %c0_i32_0 : i32, i32, i32
  }
}

</mosaic_0001>

<llo_original>
// kernel: normalized_cross_entropy.1
$region0: #{normalized_cross_entropy.1}
  #allocation0 [shape = 'u32[]', space=smem, size = 0x4, offset = 0x4, fixed_abs, tag = 'smem constant byte address 0x4 - core index']
  #allocation1 [shape = 'u32[144,128]{1,0:T(1,128)}', space=vmem, size = 0x12000, scoped, tag = 'internal scratch']
  %s0 = inlined_call_operand.hbm [shape: f32[60,256], index: 0, kind: input, shape index: {}]
  %s1 = inlined_call_operand.hbm [shape: f32[60,256], index: 1, kind: input, shape index: {}]
  %s2 = inlined_call_operand.vmem [shape: f32[2,1,256], index: 2, kind: output, shape index: {0}]
  %s3 = inlined_call_operand.vmem [shape: f32[2,1,256], index: 3, kind: output, shape index: {1}]
  %4 = xla_tuple %s2, %s3
  %s5 = sld [smem:[#allocation0]]
  $region69: #{normalized_cross_entropy.1} parent=0
    _
  %s7 = ssub.s32 1, %s5
  %s8 = scalar_select 0, %s7, %s5
  $region1: #{normalized_cross_entropy.1} parent=0
    #allocation2 [shape = 'u8[32768]{0}', space=vmem, size = 0x8000, scoped, tag = 'input window, operand 0']
    #allocation3 [shape = 's32[2]{0}', space=sflag, size = 0x8, scoped, tag = 'scoped memory for normalized_cross_entropy.1']
    #allocation4 [shape = 'u8[32768]{0}', space=vmem, size = 0x8000, scoped, tag = 'input window, operand 1']
    #allocation5 [shape = 's32[2]{0}', space=sflag, size = 0x8, scoped, tag = 'scoped memory for normalized_cross_entropy.1']
    %9 = vsyncpa [#allocation3], 0
    %s10 = scalar_lea.sflag [#allocation3], 1
    %11 = vsyncpa %s10, 0
    %12 = vsyncpa [#allocation5], 0
    %s13 = scalar_lea.sflag [#allocation5], 1
    %14 = vsyncpa %s13, 0
    loop: start=0, step=1, limit=6
    $region2: #{normalized_cross_entropy.1} parent=1 // loop_pre_header
      _
    $region3: #{normalized_cross_entropy.1} parent=1 // loop_header
      %s16 = sphi 0, %s20
      %p17 = scmp.ge.s32.totalorder %s16, 6
      %s23 = sphi 0, %s35
      %s24 = sphi 0, %s31
      %s25 = sphi 0, %s23
      %s26 = sphi 0, %s24
      %s27 = sphi 0, %s25
      %s28 = sphi 0, %s26
      %s46 = sphi 0, %s48
      %s49 = sphi 0, %s46
      %s50 = sphi 0, %s49
      %s66 = sphi 0, %s50
      %s80 = sphi 0, %s82
      %s83 = sphi 0, %s80
      %s84 = sphi 0, %s83
      %s100 = sphi 0, %s84
      %s106 = sphi 0, %s108
      %s109 = sphi 0, %s106
      %s110 = sphi 0, %s109
      %s126 = sphi 0, %s110
      %s132 = sphi 0, %s134
      %s135 = sphi 0, %s132
      %s136 = sphi 0, %s135
      %s152 = sphi 0, %s136
    $region4: #{normalized_cross_entropy.1} parent=1 // loop_header_branch
      %19 = sbr.rel (%p17) target = $region8
    $region5: #{normalized_cross_entropy.1} parent=1 // loop_body
      %s21 = ssub.s32 %s16, 1
      %s22 = ssub.s32 %s16, 2
      %s29 = sadd.s32 1, %s24
      %p30 = scmp.ge.s32.totalorder %s29, 2
      %s31 = scalar_select %p30, 0, %s29
      %s32 = sadd.s32 1, %s23
      %s33 = scalar_select %p30, %s32, %s23
      %p34 = scmp.ge.s32.totalorder %s33, 2
      %s35 = scalar_select %p34, 0, %s33
      %s36 = smul.u32 %s23, 2
      %s37 = sadd.s32 %s36, %s24
      %p38 = scmp.lt.s32.totalorder %s37, 3
      %s39 = scalar_select %p38, %s37, 3
      %s40 = smul.u32 %s35, 2
      %s41 = sadd.s32 %s40, %s31
      %p42 = scmp.lt.s32.totalorder %s41, 3
      %s43 = scalar_select %p42, %s41, 3
      %s44 = ssub.s32 %s39, %s43
      %p45 = scmp.eq.s32.totalorder %s44, 0
      %s47 = sadd.s32 %s46, 1
      %s48 = scalar_select %p45, %s46, %s47
      %p51 = pneg %p45
      %p52 = scmp.eq.s32.totalorder %s16, 3
      %p53 = por %p51, %p52
      %p54 = scmp.ne.s32.totalorder %s46, %s49
      %p55 = scmp.eq.s32.totalorder %s16, 0
      %p56 = por %p54, %p55
      %p57 = scmp.ne.s32.totalorder %s46, %s49
      %p58 = scmp.eq.s32.totalorder %s21, 3
      %p59 = por %p57, %p58
      %p60 = scmp.ne.s32.totalorder %s49, %s50
      %p61 = scmp.eq.s32.totalorder %s21, 0
      %p62 = por %p60, %p61
      %p63 = scmp.ne.s32.totalorder %s49, %s50
      %p64 = scmp.eq.s32.totalorder %s22, 3
      %p65 = por %p63, %p64
      %p67 = scmp.ne.s32.totalorder %s50, %s66
      %p68 = scmp.eq.s32.totalorder %s22, 0
      %p69 = por %p67, %p68
      %s70 = smul.u32 %s23, 2
      %s71 = sadd.s32 %s70, %s24
      %p72 = scmp.lt.s32.totalorder %s71, 3
      %s73 = scalar_select %p72, %s71, 3
      %s74 = smul.u32 %s35, 2
      %s75 = sadd.s32 %s74, %s31
      %p76 = scmp.lt.s32.totalorder %s75, 3
      %s77 = scalar_select %p76, %s75, 3
      %s78 = ssub.s32 %s73, %s77
      %p79 = scmp.eq.s32.totalorder %s78, 0
      %s81 = sadd.s32 %s80, 1
      %s82 = scalar_select %p79, %s80, %s81
      %p85 = pneg %p79
      %p86 = scmp.eq.s32.totalorder %s16, 3
      %p87 = por %p85, %p86
      %p88 = scmp.ne.s32.totalorder %s80, %s83
      %p89 = scmp.eq.s32.totalorder %s16, 0
      %p90 = por %p88, %p89
      %p91 = scmp.ne.s32.totalorder %s80, %s83
      %p92 = scmp.eq.s32.totalorder %s21, 3
      %p93 = por %p91, %p92
      %p94 = scmp.ne.s32.totalorder %s83, %s84
      %p95 = scmp.eq.s32.totalorder %s21, 0
      %p96 = por %p94, %p95
      %p97 = scmp.ne.s32.totalorder %s83, %s84
      %p98 = scmp.eq.s32.totalorder %s22, 3
      %p99 = por %p97, %p98
      %p101 = scmp.ne.s32.totalorder %s84, %s100
      %p102 = scmp.eq.s32.totalorder %s22, 0
      %p103 = por %p101, %p102
      %s104 = ssub.s32 %s23, %s35
      %p105 = scmp.eq.s32.totalorder %s104, 0
      %s107 = sadd.s32 %s106, 1
      %s108 = scalar_select %p105, %s106, %s107
      %p111 = pneg %p105
      %p112 = scmp.eq.s32.totalorder %s16, 3
      %p113 = por %p111, %p112
      %p114 = scmp.ne.s32.totalorder %s106, %s109
      %p115 = scmp.eq.s32.totalorder %s16, 0
      %p116 = por %p114, %p115
      %p117 = scmp.ne.s32.totalorder %s106, %s109
      %p118 = scmp.eq.s32.totalorder %s21, 3
      %p119 = por %p117, %p118
      %p120 = scmp.ne.s32.totalorder %s109, %s110
      %p121 = scmp.eq.s32.totalorder %s21, 0
      %p122 = por %p120, %p121
      %p123 = scmp.ne.s32.totalorder %s109, %s110
      %p124 = scmp.eq.s32.totalorder %s22, 3
      %p125 = por %p123, %p124
      %p127 = scmp.ne.s32.totalorder %s110, %s126
      %p128 = scmp.eq.s32.totalorder %s22, 0
      %p129 = por %p127, %p128
      %s130 = ssub.s32 %s23, %s35
      %p131 = scmp.eq.s32.totalorder %s130, 0
      %s133 = sadd.s32 %s132, 1
      %s134 = scalar_select %p131, %s132, %s133
      %p137 = pneg %p131
      %p138 = scmp.eq.s32.totalorder %s16, 3
      %p139 = por %p137, %p138
      %p140 = scmp.ne.s32.totalorder %s132, %s135
      %p141 = scmp.eq.s32.totalorder %s16, 0
      %p142 = por %p140, %p141
      %p143 = scmp.ne.s32.totalorder %s132, %s135
      %p144 = scmp.eq.s32.totalorder %s21, 3
      %p145 = por %p143, %p144
      %p146 = scmp.ne.s32.totalorder %s135, %s136
      %p147 = scmp.eq.s32.totalorder %s21, 0
      %p148 = por %p146, %p147
      %p149 = scmp.ne.s32.totalorder %s135, %s136
      %p150 = scmp.eq.s32.totalorder %s22, 3
      %p151 = por %p149, %p150
      %p153 = scmp.ne.s32.totalorder %s136, %s152
      %p154 = scmp.eq.s32.totalorder %s22, 0
      %p155 = por %p153, %p154
      %p156 = scmp.le.s32.totalorder 1, %s16
      %p157 = scmp.lt.s32.totalorder %s16, 5
      %p158 = pnand %p156, %p157
      %p159 = pneg %p158
      // Predicated region
      $region9: #{normalized_cross_entropy.1} parent=5 // pred_check
        _
      $region10: #{normalized_cross_entropy.1} parent=5 // pred_check_branch
        %161 = sbr.rel (%p158) target = $region12
      $region11: #{normalized_cross_entropy.1} parent=5 // pred_region
        %s162 = ssub.s32 %s16, 1
      $region12: #{normalized_cross_entropy.1} parent=5 // pred_fallthru
        _
      %p163 = scmp.lt.s32.totalorder %s16, 4
      // Predicated region
      $region13: #{normalized_cross_entropy.1} parent=5 // pred_check
        %p164 = pneg %p163
      $region14: #{normalized_cross_entropy.1} parent=5 // pred_check_branch
        %166 = sbr.rel (%p164) target = $region16
      $region15: #{normalized_cross_entropy.1} parent=5 // pred_region
        // Predicated region
        $region17: #{normalized_cross_entropy.1} parent=15 // pred_check
          %p167 = pneg %p56
        $region18: #{normalized_cross_entropy.1} parent=15 // pred_check_branch
          %169 = sbr.rel (%p167) target = $region20
        $region19: #{normalized_cross_entropy.1} parent=15 // pred_region
          %s170 = sand.u32 %s46, 1
          %s171 = scalar_lea.sflag [#allocation3], %s170
          %s172 = sand.u32 %s46, 1
          %s173 = smul.addr %s172, 32
          %s174 = scalar_lea.vmem [#allocation2], %s173
          %s175 = smul.u32 %s23, 2
          %s176 = sadd.s32 %s175, %s24
          %p177 = scmp.lt.s32.totalorder %s176, 3
          %s178 = scalar_select %p177, %s176, 3
          %s179 = smul.u32 2, %s178
          %s181 = ssub.s32 512, 512
          %182 = vsyncadd %s171, %s181
          %s183 = smul.addr %s179, 2
          %s184 = smul.addr %s183, 128
          %s185 = scalar_lea.hbm %s0, %s184
          %s186 = sshll.u32 %s174, 4
          %s187 = int_to_ptr.vmem [resolvable:$true] %s186
          %192 = dma.hbm_to_vmem [thread:$0]  %s185, 512, %s187, %s171, 256, 256, 16
        $region20: #{normalized_cross_entropy.1} parent=15 // pred_fallthru
          _
        // Predicated region
        $region21: #{normalized_cross_entropy.1} parent=15 // pred_check
          %p193 = pneg %p90
        $region22: #{normalized_cross_entropy.1} parent=15 // pred_check_branch
          %195 = sbr.rel (%p193) target = $region24
        $region23: #{normalized_cross_entropy.1} parent=15 // pred_region
          %s196 = sand.u32 %s80, 1
          %s197 = scalar_lea.sflag [#allocation5], %s196
          %s198 = sand.u32 %s80, 1
          %s199 = smul.addr %s198, 32
          %s200 = scalar_lea.vmem [#allocation4], %s199
          %s201 = smul.u32 %s23, 2
          %s202 = sadd.s32 %s201, %s24
          %p203 = scmp.lt.s32.totalorder %s202, 3
          %s204 = scalar_select %p203, %s202, 3
          %s205 = smul.u32 2, %s204
          %s207 = ssub.s32 512, 512
          %208 = vsyncadd %s197, %s207
          %s209 = smul.addr %s205, 2
          %s210 = smul.addr %s209, 128
          %s211 = scalar_lea.hbm %s1, %s210
          %s212 = sshll.u32 %s200, 4
          %s213 = int_to_ptr.vmem [resolvable:$true] %s212
          %218 = dma.hbm_to_vmem [thread:$0]  %s211, 512, %s213, %s197, 256, 256, 16
        $region24: #{normalized_cross_entropy.1} parent=15 // pred_fallthru
          _
      $region16: #{normalized_cross_entropy.1} parent=5 // pred_fallthru
        _
      %p219 = scmp.le.s32.totalorder 1, %s16
      %p220 = scmp.lt.s32.totalorder %s16, 5
      %p221 = pnand %p219, %p220
      %p222 = pneg %p221
      // Predicated region
      $region25: #{normalized_cross_entropy.1} parent=5 // pred_check
        _
      $region26: #{normalized_cross_entropy.1} parent=5 // pred_check_branch
        %224 = sbr.rel (%p221) target = $region28
      $region27: #{normalized_cross_entropy.1} parent=5 // pred_region
        %s225 = ssub.s32 %s16, 1
        %s226 = sand.u32 %s49, 1
        %s227 = scalar_lea.sflag [#allocation3], %s226
        %s228 = sand.u32 %s49, 1
        %s229 = smul.addr %s228, 32
        %s230 = scalar_lea.vmem [#allocation2], %s229
        // Predicated region
        $region29: #{normalized_cross_entropy.1} parent=27 // pred_check
          %p231 = pneg %p62
        $region30: #{normalized_cross_entropy.1} parent=27 // pred_check_branch
          %233 = sbr.rel (%p231) target = $region32
        $region31: #{normalized_cross_entropy.1} parent=27 // pred_region
          %234 = dma.done %s227, 512
        $region32: #{normalized_cross_entropy.1} parent=27 // pred_fallthru
          _
        %s235 = sand.u32 %s83, 1
        %s236 = scalar_lea.sflag [#allocation5], %s235
        %s237 = sand.u32 %s83, 1
        %s238 = smul.addr %s237, 32
        %s239 = scalar_lea.vmem [#allocation4], %s238
        // Predicated region
        $region33: #{normalized_cross_entropy.1} parent=27 // pred_check
          %p240 = pneg %p96
        $region34: #{normalized_cross_entropy.1} parent=27 // pred_check_branch
          %242 = sbr.rel (%p240) target = $region36
        $region35: #{normalized_cross_entropy.1} parent=27 // pred_region
          %243 = dma.done %s236, 512
        $region36: #{normalized_cross_entropy.1} parent=27 // pred_fallthru
          _
        %s244 = sand.u32 %s49, 1
        %s245 = scalar_lea.sflag [#allocation3], %s244
        %s246 = sand.u32 %s49, 1
        %s247 = smul.addr %s246, 32
        %s248 = scalar_lea.vmem [#allocation2], %s247
        %p249 = pneg %p62
        %p250 = pneg %p59
        %s251 = sand.u32 %s83, 1
        %s252 = scalar_lea.sflag [#allocation5], %s251
        %s253 = sand.u32 %s83, 1
        %s254 = smul.addr %s253, 32
        %s255 = scalar_lea.vmem [#allocation4], %s254
        %p256 = pneg %p96
        %p257 = pneg %p93
        %p258 = pneg %p122
        %p259 = pneg %p119
        %p260 = scmp.lt.s32.totalorder %s25, 1
        %s261 = scalar_select %p260, %s25, 1
        %s262 = smul.addr %s261, 2
        %s263 = scalar_lea.vmem %s2, %s262
        %p264 = pneg %p148
        %p265 = pneg %p145
        %p266 = scmp.lt.s32.totalorder %s25, 1
        %s267 = scalar_select %p266, %s25, 1
        %s268 = smul.addr %s267, 2
        %s269 = scalar_lea.vmem %s3, %s268
        %s270 = smul.u32 %s25, 2
        %s271 = sadd.s32 %s270, %s26
        %p272 = scmp.lt.s32.totalorder %s271, 3
        %s273 = scalar_select %p272, %s271, 3
        %s274 = smul.u32 2, %s273
        %s275 = smul.u32 %s25, 2
        %s276 = sadd.s32 %s275, %s26
        %p277 = scmp.lt.s32.totalorder %s276, 3
        %s278 = scalar_select %p277, %s276, 3
        %s279 = smul.u32 2, %s278
        %p280 = scmp.lt.s32.totalorder %s25, 1
        %s281 = scalar_select %p280, %s25, 1
        %s282 = smul.addr %s281, 2
        %s283 = scalar_lea.vmem %s2, %s282
        %p284 = scmp.lt.s32.totalorder %s25, 1
        %s285 = scalar_select %p284, %s25, 1
        %s286 = smul.addr %s285, 2
        %s287 = scalar_lea.vmem %s3, %s286
        %p288 = scmp.eq.s32.totalorder %s26, 0
        // Predicated region
        $region37: #{normalized_cross_entropy.1} parent=27 // pred_check
          %p289 = pneg %p288
        $region38: #{normalized_cross_entropy.1} parent=27 // pred_check_branch
          %291 = sbr.rel (%p289) target = $region40
        $region39: #{normalized_cross_entropy.1} parent=27 // pred_region
          %v292 = vlaneseq
          %vm293 = vcmp.ge.s32.totalorder %v292, 0
          %vm294 = vcmp.lt.s32.totalorder %v292, 256
          %vm295 = vmand %vm293, %vm294
          %296 = vst.msk [vmem:[%s283] sm:$0x3] %vm295, 0.0
          %297 = vst.msk [vmem:[%s287] sm:$0x3] %vm295, 0.0
        $region40: #{normalized_cross_entropy.1} parent=27 // pred_fallthru
          _
        %s298 = smul.u32 %s25, 2
        %s299 = sadd.s32 %s298, %s26
        %s300 = smul.u32 %s299, 16
        %s301 = sadd.s32 %s300, 16
        %p302 = scmp.le.s32.totalorder %s301, 60
        // Predicated region
        $region41: #{normalized_cross_entropy.1} parent=27 // pred_check
          %p303 = pneg %p302
        $region42: #{normalized_cross_entropy.1} parent=27 // pred_check_branch
          %305 = sbr.rel (%p303) target = $region44
        $region43: #{normalized_cross_entropy.1} parent=27 // pred_region
          %v306 = vld [vmem:[%s230] sm:$0xff]
          %v307 = vld [vmem:[%s230 + $0x8] sm:$0xff]
          %v308 = vld [vmem:[%s230 + $0x10] sm:$0xff]
          %v309 = vld [vmem:[%s230 + $0x18] sm:$0xff]
          %v310 = vld [vmem:[%s239] sm:$0xff]
          %v311 = vld [vmem:[%s239 + $0x8] sm:$0xff]
          %v312 = vld [vmem:[%s239 + $0x10] sm:$0xff]
          %v313 = vld [vmem:[%s239 + $0x18] sm:$0xff]
          %v314 = vmax.f32 %v306, %v307
          %315 = vmax.xlane.f32.xlu0 %v314
          %v316 = vpop.xlane.xlu0 %315
          %v317 = vmax.f32 %v308, %v309
          %318 = vmax.xlane.f32.xlu0 %v317
          %v319 = vpop.xlane.xlu0 %318
          %v320 = vsub.f32 %v306, %v316
          %v321 = vsub.f32 %v307, %v316
          %v322 = vsub.f32 %v308, %v319
          %v323 = vsub.f32 %v309, %v319
          %v324 = vmul.f32 %v320, 1.442695
          %v325 = vpow.pop %v324
          %v326 = vmul.f32 %v321, 1.442695
          %v327 = vpow.pop %v326
          %v328 = vmul.f32 %v322, 1.442695
          %v329 = vpow.pop %v328
          %v330 = vmul.f32 %v323, 1.442695
          %v331 = vpow.pop %v330
          %v332 = vadd.f32 %v325, %v327
          %333 = vadd.xlane.f32.xlu0 %v332
          %v334 = vpop.xlane.xlu0 %333
          %v335 = vadd.f32 %v329, %v331
          %336 = vadd.xlane.f32.xlu0 %v335
          %v337 = vpop.xlane.xlu0 %336
          %v338 = vlog2.pop %v334
          %v339 = vmul.f32 %v338, 0.6931472
          %v340 = vlog2.pop %v337
          %v341 = vmul.f32 %v340, 0.6931472
          %v342 = vsub.f32 %v320, %v339
          %v343 = vsub.f32 %v321, %v339
          %v344 = vsub.f32 %v322, %v341
          %v345 = vsub.f32 %v323, %v341
          %v346 = vmul.f32 %v310, %v342
          %v347 = vmul.f32 %v311, %v343
          %v348 = vmul.f32 %v312, %v344
          %v349 = vmul.f32 %v313, %v345
          %v350 = vld [vmem:[%s287] sm:$0x3]
          %vm351 = vcmask 7168
          %v352 = vsel %vm351, %v339, 0.0
          %v353 = vsel %vm351, %v341, 0.0
          %v354 = vadd.f32 %v352, %v353
          %355 = vadd.xlane.f32.xlu0 %v354
          %v356 = vpop.xlane.xlu0 %355
          %v357 = vrot.slane %v356, 4
          %v358 = vadd.f32 %v356, %v357
          %v359 = vrot.slane %v358, 2
          %v360 = vadd.f32 %v358, %v359
          %v361 = vrot.slane %v360, 1
          %v362 = vadd.f32 %v360, %v361
          %s363 = vtos %v362
          %v364 = vadd.f32 %v320, %v322
          %v365 = vrot.slane %v364, 4
          %v366 = vadd.f32 %v364, %v365
          %v367 = vrot.slane %v366, 2
          %v368 = vadd.f32 %v366, %v367
          %v369 = vrot.slane %v368, 1
          %v370 = vadd.f32 %v368, %v369
          %v371 = vadd.f32 %v321, %v323
          %v372 = vrot.slane %v371, 4
          %v373 = vadd.f32 %v371, %v372
          %v374 = vrot.slane %v373, 2
          %v375 = vadd.f32 %v373, %v374
          %v376 = vrot.slane %v375, 1
          %v377 = vadd.f32 %v375, %v376
          %v378 = vstv %s363
          %v379 = vsub.f32 %v378, %v370
          %v380 = vsub.f32 %v378, %v377
          %v383 = vcombine.low %v379, %v380
          %v385 = vunpack.c.l.s4 1966171168
          %v386 = vunpack.c.0.s8 %v385
          %v387 = vlaneseq
          %v388 = vshrl.u32 %v387, 7
          %v389 = vsub.s32 %v386, %v388
          %v390 = vrot.slane %v383, %v389
          %v392 = vunpack.c.l.s4 1966171168
          %v393 = vunpack.c.0.s8 %v392
          %v394 = vlaneseq
          %v395 = vshrl.u32 %v394, 7
          %v396 = vsub.s32 %v393, %v395
          %v397 = vrot.slane %v390, %v396
          %v399 = vadd.f32 %v350, %v397
          %v400 = vlaneseq
          %vm401 = vcmp.ge.s32.totalorder %v400, 0
          %vm402 = vcmp.lt.s32.totalorder %v400, 256
          %vm403 = vmand %vm401, %vm402
          %404 = vst.msk [vmem:[%s287] sm:$0x3] %vm403, %v399
          %v405 = vld [vmem:[%s283] sm:$0x3]
          %v406 = vadd.f32 %v346, %v348
          %v407 = vrot.slane %v406, 4
          %v408 = vadd.f32 %v406, %v407
          %v409 = vrot.slane %v408, 2
          %v410 = vadd.f32 %v408, %v409
          %v411 = vrot.slane %v410, 1
          %v412 = vadd.f32 %v410, %v411
          %v413 = vadd.f32 %v347, %v349
          %v414 = vrot.slane %v413, 4
          %v415 = vadd.f32 %v413, %v414
          %v416 = vrot.slane %v415, 2
          %v417 = vadd.f32 %v415, %v416
          %v418 = vrot.slane %v417, 1
          %v419 = vadd.f32 %v417, %v418
          %v420 = vsub.f32 0.0, %v412
          %v421 = vsub.f32 0.0, %v419
          %v424 = vcombine.low %v420, %v421
          %v426 = vunpack.c.l.s4 1966171168
          %v427 = vunpack.c.0.s8 %v426
          %v428 = vlaneseq
          %v429 = vshrl.u32 %v428, 7
          %v430 = vsub.s32 %v427, %v429
          %v431 = vrot.slane %v424, %v430
          %v433 = vunpack.c.l.s4 1966171168
          %v434 = vunpack.c.0.s8 %v433
          %v435 = vlaneseq
          %v436 = vshrl.u32 %v435, 7
          %v437 = vsub.s32 %v434, %v436
          %v438 = vrot.slane %v431, %v437
          %v440 = vadd.f32 %v405, %v438
          %441 = vst.msk [vmem:[%s283] sm:$0x3] %vm403, %v440
        $region44: #{normalized_cross_entropy.1} parent=27 // pred_fallthru
          _
        %p442 = scmp.gt.s32.totalorder %s301, 60
        // Predicated region
        $region45: #{normalized_cross_entropy.1} parent=27 // pred_check
          %p443 = pneg %p442
        $region46: #{normalized_cross_entropy.1} parent=27 // pred_check_branch
          %445 = sbr.rel (%p443) target = $region48
        $region47: #{normalized_cross_entropy.1} parent=27 // pred_region
          %v446 = vlaneseq
          %v447 = vshrl.u32 %v446, 7
          %v448 = vadd.s32 %v447, 8
          %v449 = vstv %s300
          %v450 = vadd.s32 %v449, %v447
          %v451 = vadd.s32 %v449, %v448
          %vm452 = vcmp.lt.s32.totalorder %v450, 60
          %vm453 = vcmp.lt.s32.totalorder %v451, 60
          %v454 = vld [vmem:[%s230] sm:$0xff]
          %v455 = vld [vmem:[%s230 + $0x8] sm:$0xff]
          %v456 = vld [vmem:[%s230 + $0x10] sm:$0xff]
          %v457 = vld [vmem:[%s230 + $0x18] sm:$0xff]
          %v458 = vsel %vm452, 1, 0
          %v459 = vsel %vm453, 1, 0
          %vm460 = vcmp.eq.s32.totalorder %v458, 1
          %vm461 = vcmp.eq.s32.totalorder %v459, 1
          %v462 = vsel %vm460, %v454, 0.0
          %v463 = vsel %vm460, %v455, 0.0
          %v464 = vsel %vm461, %v456, 0.0
          %v465 = vsel %vm461, %v457, 0.0
          %v466 = vld [vmem:[%s239] sm:$0xff]
          %v467 = vld [vmem:[%s239 + $0x8] sm:$0xff]
          %v468 = vld [vmem:[%s239 + $0x10] sm:$0xff]
          %v469 = vld [vmem:[%s239 + $0x18] sm:$0xff]
          %v470 = vmax.f32 %v462, %v463
          %471 = vmax.xlane.f32.xlu0 %v470
          %v472 = vpop.xlane.xlu0 %471
          %v473 = vmax.f32 %v464, %v465
          %474 = vmax.xlane.f32.xlu0 %v473
          %v475 = vpop.xlane.xlu0 %474
          %v476 = vsub.f32 %v462, %v472
          %v477 = vsub.f32 %v463, %v472
          %v478 = vsub.f32 %v464, %v475
          %v479 = vsub.f32 %v465, %v475
          %v480 = vmul.f32 %v476, 1.442695
          %v481 = vpow.pop %v480
          %v482 = vmul.f32 %v477, 1.442695
          %v483 = vpow.pop %v482
          %v484 = vmul.f32 %v478, 1.442695
          %v485 = vpow.pop %v484
          %v486 = vmul.f32 %v479, 1.442695
          %v487 = vpow.pop %v486
          %v488 = vadd.f32 %v481, %v483
          %489 = vadd.xlane.f32.xlu0 %v488
          %v490 = vpop.xlane.xlu0 %489
          %v491 = vadd.f32 %v485, %v487
          %492 = vadd.xlane.f32.xlu0 %v491
          %v493 = vpop.xlane.xlu0 %492
          %v494 = vlog2.pop %v490
          %v495 = vmul.f32 %v494, 0.6931472
          %v496 = vlog2.pop %v493
          %v497 = vmul.f32 %v496, 0.6931472
          %v498 = vsub.f32 %v476, %v495
          %v499 = vsub.f32 %v477, %v495
          %v500 = vsub.f32 %v478, %v497
          %v501 = vsub.f32 %v479, %v497
          %v502 = vmul.f32 %v466, %v498
          %v503 = vmul.f32 %v467, %v499
          %v504 = vmul.f32 %v468, %v500
          %v505 = vmul.f32 %v469, %v501
          %v506 = vsel %vm460, %v476, 0.0
          %v507 = vsel %vm460, %v477, 0.0
          %v508 = vsel %vm461, %v478, 0.0
          %v509 = vsel %vm461, %v479, 0.0
          %v510 = vsel %vm452, %v495, 0.0
          %v511 = vsel %vm453, %v497, 0.0
          %v512 = vsel %vm460, %v502, 0.0
          %v513 = vsel %vm460, %v503, 0.0
          %v514 = vsel %vm461, %v504, 0.0
          %v515 = vsel %vm461, %v505, 0.0
          %v516 = vld [vmem:[%s287] sm:$0x3]
          %vm517 = vcmask 7168
          %v518 = vsel %vm517, %v510, 0.0
          %v519 = vsel %vm517, %v511, 0.0
          %v520 = vadd.f32 %v518, %v519
          %521 = vadd.xlane.f32.xlu0 %v520
          %v522 = vpop.xlane.xlu0 %521
          %v523 = vrot.slane %v522, 4
          %v524 = vadd.f32 %v522, %v523
          %v525 = vrot.slane %v524, 2
          %v526 = vadd.f32 %v524, %v525
          %v527 = vrot.slane %v526, 1
          %v528 = vadd.f32 %v526, %v527
          %s529 = vtos %v528
          %v530 = vadd.f32 %v506, %v508
          %v531 = vrot.slane %v530, 4
          %v532 = vadd.f32 %v530, %v531
          %v533 = vrot.slane %v532, 2
          %v534 = vadd.f32 %v532, %v533
          %v535 = vrot.slane %v534, 1
          %v536 = vadd.f32 %v534, %v535
          %v537 = vadd.f32 %v507, %v509
          %v538 = vrot.slane %v537, 4
          %v539 = vadd.f32 %v537, %v538
          %v540 = vrot.slane %v539, 2
          %v541 = vadd.f32 %v539, %v540
          %v542 = vrot.slane %v541, 1
          %v543 = vadd.f32 %v541, %v542
          %v544 = vstv %s529
          %v545 = vsub.f32 %v544, %v536
          %v546 = vsub.f32 %v544, %v543
          %v549 = vcombine.low %v545, %v546
          %v551 = vunpack.c.l.s4 1966171168
          %v552 = vunpack.c.0.s8 %v551
          %v553 = vlaneseq
          %v554 = vshrl.u32 %v553, 7
          %v555 = vsub.s32 %v552, %v554
          %v556 = vrot.slane %v549, %v555
          %v558 = vunpack.c.l.s4 1966171168
          %v559 = vunpack.c.0.s8 %v558
          %v560 = vlaneseq
          %v561 = vshrl.u32 %v560, 7
          %v562 = vsub.s32 %v559, %v561
          %v563 = vrot.slane %v556, %v562
          %v565 = vadd.f32 %v516, %v563
          %v566 = vlaneseq
          %vm567 = vcmp.ge.s32.totalorder %v566, 0
          %vm568 = vcmp.lt.s32.totalorder %v566, 256
          %vm569 = vmand %vm567, %vm568
          %570 = vst.msk [vmem:[%s287] sm:$0x3] %vm569, %v565
          %v571 = vld [vmem:[%s283] sm:$0x3]
          %v572 = vadd.f32 %v512, %v514
          %v573 = vrot.slane %v572, 4
          %v574 = vadd.f32 %v572, %v573
          %v575 = vrot.slane %v574, 2
          %v576 = vadd.f32 %v574, %v575
          %v577 = vrot.slane %v576, 1
          %v578 = vadd.f32 %v576, %v577
          %v579 = vadd.f32 %v513, %v515
          %v580 = vrot.slane %v579, 4
          %v581 = vadd.f32 %v579, %v580
          %v582 = vrot.slane %v581, 2
          %v583 = vadd.f32 %v581, %v582
          %v584 = vrot.slane %v583, 1
          %v585 = vadd.f32 %v583, %v584
          %v586 = vsub.f32 0.0, %v578
          %v587 = vsub.f32 0.0, %v585
          %v590 = vcombine.low %v586, %v587
          %v592 = vunpack.c.l.s4 1966171168
          %v593 = vunpack.c.0.s8 %v592
          %v594 = vlaneseq
          %v595 = vshrl.u32 %v594, 7
          %v596 = vsub.s32 %v593, %v595
          %v597 = vrot.slane %v590, %v596
          %v599 = vunpack.c.l.s4 1966171168
          %v600 = vunpack.c.0.s8 %v599
          %v601 = vlaneseq
          %v602 = vshrl.u32 %v601, 7
          %v603 = vsub.s32 %v600, %v602
          %v604 = vrot.slane %v597, %v603
          %v606 = vadd.f32 %v571, %v604
          %607 = vst.msk [vmem:[%s283] sm:$0x3] %vm569, %v606
        $region48: #{normalized_cross_entropy.1} parent=27 // pred_fallthru
          _
        %p608 = scmp.lt.s32.totalorder %s25, 1
        %s609 = scalar_select %p608, %s25, 1
        %s610 = smul.addr %s609, 2
        %s611 = scalar_lea.vmem %s2, %s610
        %p612 = scmp.lt.s32.totalorder %s25, 1
        %s613 = scalar_select %p612, %s25, 1
        %s614 = smul.addr %s613, 2
        %s615 = scalar_lea.vmem %s3, %s614
        // Predicated region
        $region49: #{normalized_cross_entropy.1} parent=27 // pred_check
          %p616 = pneg %p119
        $region50: #{normalized_cross_entropy.1} parent=27 // pred_check_branch
          %618 = sbr.rel (%p616) target = $region52
        $region51: #{normalized_cross_entropy.1} parent=27 // pred_region
          _
        $region52: #{normalized_cross_entropy.1} parent=27 // pred_fallthru
          _
        // Predicated region
        $region53: #{normalized_cross_entropy.1} parent=27 // pred_check
          %p619 = pneg %p145
        $region54: #{normalized_cross_entropy.1} parent=27 // pred_check_branch
          %621 = sbr.rel (%p619) target = $region56
        $region55: #{normalized_cross_entropy.1} parent=27 // pred_region
          _
        $region56: #{normalized_cross_entropy.1} parent=27 // pred_fallthru
          _
      $region28: #{normalized_cross_entropy.1} parent=5 // pred_fallthru
        _
      %p622 = scmp.le.s32.totalorder 2, %s16
      // Predicated region
      $region57: #{normalized_cross_entropy.1} parent=5 // pred_check
        %p623 = pneg %p622
      $region58: #{normalized_cross_entropy.1} parent=5 // pred_check_branch
        %625 = sbr.rel (%p623) target = $region60
      $region59: #{normalized_cross_entropy.1} parent=5 // pred_region
        %s626 = ssub.s32 %s16, 2
        // Predicated region
        $region61: #{normalized_cross_entropy.1} parent=59 // pred_check
          %p627 = pneg %p125
        $region62: #{normalized_cross_entropy.1} parent=59 // pred_check_branch
          %629 = sbr.rel (%p627) target = $region64
        $region63: #{normalized_cross_entropy.1} parent=59 // pred_region
          %p630 = scmp.lt.s32.totalorder %s27, 1
          %s631 = scalar_select %p630, %s27, 1
          %s632 = smul.addr %s631, 2
          %s633 = scalar_lea.vmem %s2, %s632
        $region64: #{normalized_cross_entropy.1} parent=59 // pred_fallthru
          _
        // Predicated region
        $region65: #{normalized_cross_entropy.1} parent=59 // pred_check
          %p634 = pneg %p151
        $region66: #{normalized_cross_entropy.1} parent=59 // pred_check_branch
          %636 = sbr.rel (%p634) target = $region68
        $region67: #{normalized_cross_entropy.1} parent=59 // pred_region
          %p637 = scmp.lt.s32.totalorder %s27, 1
          %s638 = scalar_select %p637, %s27, 1
          %s639 = smul.addr %s638, 2
          %s640 = scalar_lea.vmem %s3, %s639
        $region68: #{normalized_cross_entropy.1} parent=59 // pred_fallthru
          _
      $region60: #{normalized_cross_entropy.1} parent=5 // pred_fallthru
        _
    $region6: #{normalized_cross_entropy.1} parent=1 // loop_footer
      %s20 = sadd.s32 1, %s16
    $region7: #{normalized_cross_entropy.1} parent=1 // loop_footer_branch
      %15 = sbr.rel target = $region3
    $region8: #{normalized_cross_entropy.1} parent=1 // loop_exit
      _
    %641 = vsyncpa [#allocation3], 1
    %s642 = scalar_lea.sflag [#allocation3], 1
    %643 = vsyncpa %s642, 1
    %644 = vsyncpa [#allocation5], 1
    %s645 = scalar_lea.sflag [#allocation5], 1
    %646 = vsyncpa %s645, 1

</llo_original>
